<compile_context>
chip_gen: v7x
topology: tpu7x:2x2x1
jax: 0.10.0
libtpu: 0.0.40
codegen_flags: <defaults>
</compile_context>

<pallas_src>
import jax
import jax.numpy as jnp
from jax.experimental import pallas as pl
from jax.experimental.pallas import tpu as pltpu

KH = KW = 4
STRIDE = 2
PAD = 1


def _upblock_kernel(w_ref, p_ref, b_ref, o_ref):
    # w_ref: (Nc, K)  folded sub-pixel weights (resident across grid steps)
    # p_ref: (K, tm)  im2col patch tile (lane axis = flattened batch*spatial groups)
    # b_ref: (Nc, 1)  folded bias
    # o_ref: (Nc, tm) output tile (lane-dense)
    acc = jnp.dot(w_ref[...], p_ref[...], preferred_element_type=jnp.float32)
    acc = acc + b_ref[...]
    o_ref[...] = jnp.maximum(acc, 0.0).astype(o_ref.dtype)


def _upblock_dropout_kernel(w_ref, p_ref, b_ref, m_ref, o_ref):
    # m_ref: (Nc, tm) dropout scale in {0., 2.}; applied before ReLU, as in the module.
    acc = jnp.dot(w_ref[...], p_ref[...], preferred_element_type=jnp.float32)
    acc = (acc + b_ref[...]) * m_ref[...]
    o_ref[...] = jnp.maximum(acc, 0.0).astype(o_ref.dtype)


def _fold_weight(w_t, compute_dtype):
    """PyTorch ConvTranspose2d weight (Cin, Cout, 4, 4) -> (4*Cout, 4*Cin) matrix.

    Row index = (r*2 + c)*Cout + co  (output sub-pixel phase, channel)
    Col index = (dh*2 + dw)*Cin + ci (2x2 window tap, input channel)
    with kernel taps kh = 2 + r - 2*dh, kw = 2 + c - 2*dw.
    """
    wk = jnp.transpose(w_t, (2, 3, 0, 1))  # (KH, KW, Cin, Cout)
    rows = []
    for r in range(2):
        for c in range(2):
            cols = []
            for dh in range(2):
                for dw in range(2):
                    kh = 2 + r - 2 * dh
                    kw = 2 + c - 2 * dw
                    cols.append(jnp.transpose(wk[kh, kw]))       # (Cout, Cin)
            rows.append(jnp.concatenate(cols, axis=1))           # (Cout, 4*Cin)
    return jnp.concatenate(rows, axis=0).astype(compute_dtype)   # (4*Cout, 4*Cin)


def upblock_forward(x_nchw, w_t, b, *, use_dropout=False, dropout_key=None,
                    compute_dtype=jnp.float32, tm=128):
    """Forward of UpBlock. x: (N, Cin, H, W); w_t: (Cin, Cout, 4, 4); b: (Cout,)."""
    N, Cin, H, W = x_nchw.shape
    Cout = w_t.shape[1]
    OH, OW = STRIDE * H, STRIDE * W
    K = 4 * Cin
    Nc = 4 * Cout
    Hg, Wg = H + 1, W + 1                       # one 2x2-window group per padded position
    M = N * Hg * Wg
    Mp = pl.cdiv(M, tm) * tm                    # pad flattened group axis to the tile size

    # Sub-pixel im2col: group (n, G, Hc) is the 2x2 window xpad[n, G:G+2, Hc:Hc+2, :] of
    # the 1-padded input and produces output rows (2G-1, 2G), cols (2Hc-1, 2Hc).
    x = jnp.transpose(x_nchw, (0, 2, 3, 1))                       # NHWC
    xpad = jnp.pad(x, ((0, 0), (1, 1), (1, 1), (0, 0)))
    taps = [xpad[:, dh:dh + Hg, dw:dw + Wg, :] for dh in (0, 1) for dw in (0, 1)]
    pt = jnp.stack(taps, axis=0)                                  # (4, N, Hg, Wg, Cin)
    pt = jnp.transpose(pt, (0, 4, 1, 2, 3)).reshape(K, M)         # (K, M)
    pt = jnp.pad(pt, ((0, 0), (0, Mp - M))).astype(compute_dtype)

    w2 = _fold_weight(w_t, compute_dtype)                         # (Nc, K)
    b2 = jnp.tile(b.astype(jnp.float32), 4).reshape(Nc, 1)        # bias per (r, c, co)

    in_specs = [
        pl.BlockSpec((Nc, K), lambda i: (0, 0)),                  # weights: resident
        pl.BlockSpec((K, tm), lambda i: (0, i)),                  # patch tile
        pl.BlockSpec((Nc, 1), lambda i: (0, 0)),                  # bias: resident
    ]
    operands = [w2, pt, b2]
    kernel = _upblock_kernel
    if use_dropout:
        # TODO(synk): RNG stream differs from torch.nn.Dropout; semantics match
        # (p=0.5 zeroing, x2 rescale, applied before the ReLU).
        if dropout_key is None:
            dropout_key = jax.random.PRNGKey(0)
        keep = jax.random.bernoulli(dropout_key, 0.5, (Nc, Mp))
        mask = keep.astype(jnp.float32) * 2.0                     # lane-dense mask
        in_specs.append(pl.BlockSpec((Nc, tm), lambda i: (0, i)))
        operands.append(mask)
        kernel = _upblock_dropout_kernel

    out = pl.pallas_call(
        kernel,
        out_shape=jax.ShapeDtypeStruct((Nc, Mp), jnp.float32),
        grid_spec=pltpu.PrefetchScalarGridSpec(
            num_scalar_prefetch=0,
            grid=(Mp // tm,),
            in_specs=in_specs,
            out_specs=pl.BlockSpec((Nc, tm), lambda i: (0, i)),
        ),
        compiler_params=pltpu.CompilerParams(
            dimension_semantics=("parallel",),
            vmem_limit_bytes=64 * 1024 * 1024,
        ),
    )(*operands)

    # Pixel-shuffle (pure layout) back to NCHW and drop the one-row/col halo.
    out = out[:, :M].reshape(2, 2, Cout, N, Hg, Wg)               # (r, c, co, n, G, Hc)
    out = jnp.transpose(out, (3, 2, 4, 0, 5, 1))                  # (n, co, G, r, Hc, c)
    out = out.reshape(N, Cout, 2 * Hg, 2 * Wg)
    return out[:, :, 1:OH + 1, 1:OW + 1]                          # (N, Cout, 2H, 2W)


if __name__ == "__main__":
    key = jax.random.PRNGKey(0)
    k1, k2, k3, k4 = jax.random.split(key, 4)

    N, Cin, H, W = 2, 4, 16, 16
    Cout = 8

    x = jax.random.normal(k1, (N, Cin, H, W), jnp.float32)
    # PyTorch ConvTranspose2d weight shape: (in_channels, out_channels, kH, kW)
    w_t = jax.random.normal(k2, (Cin, Cout, KH, KW), jnp.float32) * 0.1
    b = jax.random.normal(k3, (Cout,), jnp.float32) * 0.1

    # Pure-JAX reference: lhs-dilated conv with flipped/transposed kernel == ConvTranspose2d.
    w_oihw = jnp.transpose(w_t, (1, 0, 2, 3))[:, :, ::-1, ::-1]
    ref = jax.lax.conv_general_dilated(
        x, w_oihw, window_strides=(1, 1), padding=((2, 2), (2, 2)),
        lhs_dilation=(2, 2), dimension_numbers=("NCHW", "OIHW", "NCHW"))
    ref = jnp.maximum(ref + b.reshape(1, Cout, 1, 1), 0.0)

    # f32 operands: tight check.
    out = jax.block_until_ready(upblock_forward(x, w_t, b, use_dropout=False))
    assert out.shape == (N, Cout, 2 * H, 2 * W), out.shape
    assert jnp.allclose(out, ref, atol=1e-4, rtol=1e-4), float(jnp.max(jnp.abs(out - ref)))

    # bf16 operands (MXU-friendly on v6e/v7x), f32 accumulation: looser check.
    out_bf16 = jax.block_until_ready(
        upblock_forward(x, w_t, b, use_dropout=False, compute_dtype=jnp.bfloat16))
    assert jnp.allclose(out_bf16, ref, atol=5e-2, rtol=5e-2), \
        float(jnp.max(jnp.abs(out_bf16 - ref)))

    # Dropout path: every output must be 0 or (2x the no-dropout output).
    out_d = jax.block_until_ready(
        upblock_forward(x, w_t, b, use_dropout=True, dropout_key=k4))
    assert out_d.shape == out.shape
    ok = (jnp.abs(out_d) < 1e-6) | (jnp.abs(out_d - 2.0 * out) < 1e-4)
    assert bool(jnp.all(ok)) and bool(jnp.all(jnp.isfinite(out_d)))

    print("KERNEL_OK")
</pallas_src>

<mosaic_0001>
module attributes {stable_mosaic.version = 11 : i64} {
  func.func @_upblock_kernel(%arg0: i32, %arg1: memref<32x16xf32, #tpu.memory_space<vmem>>, %arg2: memref<16x128xf32, #tpu.memory_space<vmem>>, %arg3: memref<32x1xf32, #tpu.memory_space<vmem>>, %arg4: memref<32x128xf32, #tpu.memory_space<vmem>>) attributes {dimension_semantics = [#tpu.dimension_semantics<parallel>], iteration_bounds = array<i64: 5>, scalar_prefetch = 0 : i64, scratch_operands = 0 : i64, tpu.core_type = #tpu.core_type<tc>, window_params = [{pipeline_mode = #tpu.pipeline_mode<synchronous>, transform_indices = @transform_0, window_bounds = array<i64: 32, 16>}, {transform_indices = @transform_1, window_bounds = array<i64: 16, 128>}, {pipeline_mode = #tpu.pipeline_mode<synchronous>, transform_indices = @transform_2, window_bounds = array<i64: 32, 1>}, {transform_indices = @transform_3, window_bounds = array<i64: 32, 128>}]} {
    %c0 = arith.constant 0 : index
    %c0_0 = arith.constant 0 : index
    %0 = vector.load %arg1[%c0, %c0_0] : memref<32x16xf32, #tpu.memory_space<vmem>>, vector<32x16xf32>
    %c0_1 = arith.constant 0 : index
    %c0_2 = arith.constant 0 : index
    %1 = vector.load %arg2[%c0_1, %c0_2] : memref<16x128xf32, #tpu.memory_space<vmem>>, vector<16x128xf32>
    %cst = arith.constant dense<0.000000e+00> : vector<32x128xf32>
    %2 = tpu.matmul %0, %1, %cst {dimension_numbers = #tpu.dot_dimension_numbers<[1], [0], [0], [1], [0, 0, 1, 1], [], []>} : vector<32x16xf32>, vector<16x128xf32>, vector<32x128xf32> -> vector<32x128xf32>
    %c0_3 = arith.constant 0 : index
    %c0_4 = arith.constant 0 : index
    %3 = vector.load %arg3[%c0_3, %c0_4] : memref<32x1xf32, #tpu.memory_space<vmem>>, vector<32x1xf32>
    %4 = vector.broadcast %3 : vector<32x1xf32> to vector<32x128xf32>
    %5 = arith.addf %2, %4 : vector<32x128xf32>
    %cst_5 = arith.constant 0.000000e+00 : f32
    %6 = vector.broadcast %cst_5 : f32 to vector<32x128xf32>
    %7 = arith.maximumf %5, %6 : vector<32x128xf32>
    %c0_6 = arith.constant 0 : index
    %c0_7 = arith.constant 0 : index
    %8 = vector.load %arg4[%c0_6, %c0_7] : memref<32x128xf32, #tpu.memory_space<vmem>>, vector<32x128xf32>
    tpu.vector_store %arg4[%c0_6, %c0_7], %7 {strides = array<i32>} : memref<32x128xf32, #tpu.memory_space<vmem>>, vector<32x128xf32>,
    return
  }
  func.func @transform_0(%arg0: i32) -> (i32, i32) {
    %c0_i32 = arith.constant 0 : i32
    %c0_i32_0 = arith.constant 0 : i32
    %c0_i32_1 = arith.constant 0 : i32
    return %c0_i32, %c0_i32_0 : i32, i32
  }
  func.func @transform_1(%arg0: i32) -> (i32, i32) {
    %c0_i32 = arith.constant 0 : i32
    %c0_i32_0 = arith.constant 0 : i32
    return %c0_i32, %arg0 : i32, i32
  }
  func.func @transform_2(%arg0: i32) -> (i32, i32) {
    %c0_i32 = arith.constant 0 : i32
    %c0_i32_0 = arith.constant 0 : i32
    %c0_i32_1 = arith.constant 0 : i32
    return %c0_i32, %c0_i32_0 : i32, i32
  }
  func.func @transform_3(%arg0: i32) -> (i32, i32) {
    %c0_i32 = arith.constant 0 : i32
    %c0_i32_0 = arith.constant 0 : i32
    return %c0_i32, %arg0 : i32, i32
  }
}

</mosaic_0001>

<llo_original>
// kernel: tpu_custom_call.1
$region0: #{tpu_custom_call.1}
  #allocation0 [shape = 'u32[]', space=smem, size = 0x4, offset = 0x4, fixed_abs, tag = 'smem constant byte address 0x4 - core index']
  #allocation1 [shape = 'u32[144,128]{1,0:T(1,128)}', space=vmem, size = 0x12000, scoped, tag = 'internal scratch']
  %s0 = inlined_call_operand.hbm [shape: f32[32,16], index: 0, kind: input, shape index: {}]
  %s1 = inlined_call_operand.hbm [shape: f32[16,640], index: 1, kind: input, shape index: {}]
  %s2 = inlined_call_operand.hbm [shape: f32[32,1], index: 2, kind: input, shape index: {}]
  %s3 = inlined_call_operand.hbm [shape: f32[32,640], index: 3, kind: output, shape index: {}]
  %s4 = sld [smem:[#allocation0]]
  $region57: #{tpu_custom_call.1} parent=0
    _
  %s6 = ssub.s32 1, %s4
  %s7 = scalar_select 0, %s6, %s4
  $region1: #{tpu_custom_call.1} parent=0
    #allocation2 [shape = 'u8[16384]{0}', space=vmem, size = 0x4000, scoped, tag = 'input window, operand 0, single buffered']
    #allocation3 [shape = 's32[2]{0}', space=sflag, size = 0x8, scoped, tag = 'scoped memory for tpu_custom_call.1']
    #allocation4 [shape = 's32[2]{0}', space=sflag, size = 0x8, scoped, tag = 'scoped memory for tpu_custom_call.1']
    #allocation5 [shape = 'u8[16384]{0}', space=vmem, size = 0x4000, scoped, tag = 'input window, operand 1']
    #allocation6 [shape = 's32[2]{0}', space=sflag, size = 0x8, scoped, tag = 'scoped memory for tpu_custom_call.1']
    #allocation7 [shape = 'u8[16384]{0}', space=vmem, size = 0x4000, scoped, tag = 'input window, operand 2, single buffered']
    #allocation8 [shape = 'u8[32768]{0}', space=vmem, size = 0x8000, scoped, tag = 'output window, operand 0']
    %8 = vsyncpa [#allocation3], 0
    %9 = vsyncpa [#allocation6], 0
    %s10 = scalar_lea.sflag [#allocation6], 1
    %11 = vsyncpa %s10, 0
    %12 = vsyncpa [#allocation4], 0
    %s13 = scalar_lea.sflag [#allocation4], 1
    %14 = vsyncpa %s13, 0
    loop: start=0, step=1, limit=7
    $region2: #{tpu_custom_call.1} parent=1 // loop_pre_header
      _
    $region3: #{tpu_custom_call.1} parent=1 // loop_header
      %s16 = sphi 0, %s20
      %p17 = scmp.ge.s32.totalorder %s16, 7
      %s24 = sphi 0, %s24
      %s26 = sphi 0, %s24
      %s27 = sphi 0, %s26
      %s41 = sphi 0, %s27
      %s47 = sphi 0, %s49
      %s50 = sphi 0, %s47
      %s51 = sphi 0, %s50
      %s67 = sphi 0, %s51
      %s71 = sphi 0, %s71
      %s73 = sphi 0, %s71
      %s74 = sphi 0, %s73
      %s88 = sphi 0, %s74
      %s94 = sphi 0, %s96
      %s97 = sphi 0, %s94
      %s98 = sphi 0, %s97
      %s114 = sphi 0, %s98
    $region4: #{tpu_custom_call.1} parent=1 // loop_header_branch
      %19 = sbr.rel (%p17) target = $region8
    $region5: #{tpu_custom_call.1} parent=1 // loop_body
      %s21 = ssub.s32 %s16, 1
      %s22 = ssub.s32 %s16, 2
      %s23 = sadd.s32 %s16, 1
      %s25 = sadd.s32 %s24, 1
      %p28 = scmp.eq.s32.totalorder %s16, 4
      %p29 = scmp.ne.s32.totalorder %s24, %s26
      %p30 = scmp.eq.s32.totalorder %s16, 0
      %p31 = por %p29, %p30
      %p32 = scmp.ne.s32.totalorder %s24, %s26
      %p33 = scmp.eq.s32.totalorder %s21, 4
      %p34 = por %p32, %p33
      %p35 = scmp.ne.s32.totalorder %s26, %s27
      %p36 = scmp.eq.s32.totalorder %s21, 0
      %p37 = por %p35, %p36
      %p38 = scmp.ne.s32.totalorder %s26, %s27
      %p39 = scmp.eq.s32.totalorder %s22, 4
      %p40 = por %p38, %p39
      %p42 = scmp.ne.s32.totalorder %s27, %s41
      %p43 = scmp.eq.s32.totalorder %s22, 0
      %p44 = por %p42, %p43
      %s45 = ssub.s32 %s16, %s23
      %p46 = scmp.eq.s32.totalorder %s45, 0
      %s48 = sadd.s32 %s47, 1
      %s49 = scalar_select %p46, %s47, %s48
      %p52 = pneg %p46
      %p53 = scmp.eq.s32.totalorder %s16, 4
      %p54 = por %p52, %p53
      %p55 = scmp.ne.s32.totalorder %s47, %s50
      %p56 = scmp.eq.s32.totalorder %s16, 0
      %p57 = por %p55, %p56
      %p58 = scmp.ne.s32.totalorder %s47, %s50
      %p59 = scmp.eq.s32.totalorder %s21, 4
      %p60 = por %p58, %p59
      %p61 = scmp.ne.s32.totalorder %s50, %s51
      %p62 = scmp.eq.s32.totalorder %s21, 0
      %p63 = por %p61, %p62
      %p64 = scmp.ne.s32.totalorder %s50, %s51
      %p65 = scmp.eq.s32.totalorder %s22, 4
      %p66 = por %p64, %p65
      %p68 = scmp.ne.s32.totalorder %s51, %s67
      %p69 = scmp.eq.s32.totalorder %s22, 0
      %p70 = por %p68, %p69
      %s72 = sadd.s32 %s71, 1
      %p75 = scmp.eq.s32.totalorder %s16, 4
      %p76 = scmp.ne.s32.totalorder %s71, %s73
      %p77 = scmp.eq.s32.totalorder %s16, 0
      %p78 = por %p76, %p77
      %p79 = scmp.ne.s32.totalorder %s71, %s73
      %p80 = scmp.eq.s32.totalorder %s21, 4
      %p81 = por %p79, %p80
      %p82 = scmp.ne.s32.totalorder %s73, %s74
      %p83 = scmp.eq.s32.totalorder %s21, 0
      %p84 = por %p82, %p83
      %p85 = scmp.ne.s32.totalorder %s73, %s74
      %p86 = scmp.eq.s32.totalorder %s22, 4
      %p87 = por %p85, %p86
      %p89 = scmp.ne.s32.totalorder %s74, %s88
      %p90 = scmp.eq.s32.totalorder %s22, 0
      %p91 = por %p89, %p90
      %s92 = ssub.s32 %s16, %s23
      %p93 = scmp.eq.s32.totalorder %s92, 0
      %s95 = sadd.s32 %s94, 1
      %s96 = scalar_select %p93, %s94, %s95
      %p99 = pneg %p93
      %p100 = scmp.eq.s32.totalorder %s16, 4
      %p101 = por %p99, %p100
      %p102 = scmp.ne.s32.totalorder %s94, %s97
      %p103 = scmp.eq.s32.totalorder %s16, 0
      %p104 = por %p102, %p103
      %p105 = scmp.ne.s32.totalorder %s94, %s97
      %p106 = scmp.eq.s32.totalorder %s21, 4
      %p107 = por %p105, %p106
      %p108 = scmp.ne.s32.totalorder %s97, %s98
      %p109 = scmp.eq.s32.totalorder %s21, 0
      %p110 = por %p108, %p109
      %p111 = scmp.ne.s32.totalorder %s97, %s98
      %p112 = scmp.eq.s32.totalorder %s22, 4
      %p113 = por %p111, %p112
      %p115 = scmp.ne.s32.totalorder %s98, %s114
      %p116 = scmp.eq.s32.totalorder %s22, 0
      %p117 = por %p115, %p116
      %p118 = scmp.le.s32.totalorder 1, %s16
      %p119 = scmp.lt.s32.totalorder %s16, 6
      %p120 = pnand %p118, %p119
      %p121 = pneg %p120
      // Predicated region
      $region9: #{tpu_custom_call.1} parent=5 // pred_check
        _
      $region10: #{tpu_custom_call.1} parent=5 // pred_check_branch
        %123 = sbr.rel (%p120) target = $region12
      $region11: #{tpu_custom_call.1} parent=5 // pred_region
        %s124 = ssub.s32 %s16, 1
        // Predicated region
        $region13: #{tpu_custom_call.1} parent=11 // pred_check
          %p125 = pneg %p37
        $region14: #{tpu_custom_call.1} parent=11 // pred_check_branch
          %127 = sbr.rel (%p125) target = $region16
        $region15: #{tpu_custom_call.1} parent=11 // pred_region
          %s129 = ssub.s32 512, 512
          %130 = vsyncadd [#allocation3], %s129
          %s131 = sshll.u32 [#allocation2], 4
          %s132 = int_to_ptr.vmem [resolvable:$true] %s131
          %137 = dma.hbm_to_vmem [thread:$0]  %s0, 512, %s132, [#allocation3], 128, 128, 8
        $region16: #{tpu_custom_call.1} parent=11 // pred_fallthru
          _
        // Predicated region
        $region17: #{tpu_custom_call.1} parent=11 // pred_check
          %p138 = pneg %p84
        $region18: #{tpu_custom_call.1} parent=11 // pred_check_branch
          %140 = sbr.rel (%p138) target = $region20
        $region19: #{tpu_custom_call.1} parent=11 // pred_region
          %s142 = ssub.s32 512, 512
          %143 = vsyncadd [#allocation6], %s142
          %s144 = sshll.u32 [#allocation7], 4
          %s145 = int_to_ptr.vmem [resolvable:$true] %s144
          %150 = dma.hbm_to_vmem [thread:$0]  %s2, 512, %s145, [#allocation6], 128, 128, 8
        $region20: #{tpu_custom_call.1} parent=11 // pred_fallthru
          _
      $region12: #{tpu_custom_call.1} parent=5 // pred_fallthru
        _
      %p151 = scmp.lt.s32.totalorder %s16, 5
      // Predicated region
      $region21: #{tpu_custom_call.1} parent=5 // pred_check
        %p152 = pneg %p151
      $region22: #{tpu_custom_call.1} parent=5 // pred_check_branch
        %154 = sbr.rel (%p152) target = $region24
      $region23: #{tpu_custom_call.1} parent=5 // pred_region
        // Predicated region
        $region25: #{tpu_custom_call.1} parent=23 // pred_check
          %p155 = pneg %p57
        $region26: #{tpu_custom_call.1} parent=23 // pred_check_branch
          %157 = sbr.rel (%p155) target = $region28
        $region27: #{tpu_custom_call.1} parent=23 // pred_region
          %s158 = sand.u32 %s16, 1
          %s159 = scalar_lea.sflag [#allocation6], %s158
          %s160 = sand.u32 %s47, 1
          %s161 = smul.addr %s160, 16
          %s162 = scalar_lea.vmem [#allocation5], %s161
          %s164 = ssub.s32 256, 256
          %165 = vsyncadd %s159, %s164
          %s166 = smul.addr %s16, 128
          %s167 = scalar_lea.hbm %s1, %s166
          %s168 = sshll.u32 %s162, 4
          %s169 = int_to_ptr.vmem [resolvable:$true] %s168
          %174 = dma.hbm_to_vmem [thread:$0]  %s167, 256, %s169, %s159, 640, 128, 8
        $region28: #{tpu_custom_call.1} parent=23 // pred_fallthru
          _
      $region24: #{tpu_custom_call.1} parent=5 // pred_fallthru
        _
      %p175 = scmp.le.s32.totalorder 1, %s16
      %p176 = scmp.lt.s32.totalorder %s16, 6
      %p177 = pnand %p175, %p176
      %p178 = pneg %p177
      // Predicated region
      $region29: #{tpu_custom_call.1} parent=5 // pred_check
        _
      $region30: #{tpu_custom_call.1} parent=5 // pred_check_branch
        %180 = sbr.rel (%p177) target = $region32
      $region31: #{tpu_custom_call.1} parent=5 // pred_region
        %s181 = ssub.s32 %s16, 1
        // Predicated region
        $region33: #{tpu_custom_call.1} parent=31 // pred_check
          %p182 = pneg %p37
        $region34: #{tpu_custom_call.1} parent=31 // pred_check_branch
          %184 = sbr.rel (%p182) target = $region36
        $region35: #{tpu_custom_call.1} parent=31 // pred_region
          %185 = dma.done [#allocation3], 512
        $region36: #{tpu_custom_call.1} parent=31 // pred_fallthru
          _
        %s186 = sand.u32 %s21, 1
        %s187 = scalar_lea.sflag [#allocation6], %s186
        %s188 = sand.u32 %s50, 1
        %s189 = smul.addr %s188, 16
        %s190 = scalar_lea.vmem [#allocation5], %s189
        // Predicated region
        $region37: #{tpu_custom_call.1} parent=31 // pred_check
          %p191 = pneg %p63
        $region38: #{tpu_custom_call.1} parent=31 // pred_check_branch
          %193 = sbr.rel (%p191) target = $region40
        $region39: #{tpu_custom_call.1} parent=31 // pred_region
          %194 = dma.done %s187, 256
        $region40: #{tpu_custom_call.1} parent=31 // pred_fallthru
          _
        // Predicated region
        $region41: #{tpu_custom_call.1} parent=31 // pred_check
          %p195 = pneg %p84
        $region42: #{tpu_custom_call.1} parent=31 // pred_check_branch
          %197 = sbr.rel (%p195) target = $region44
        $region43: #{tpu_custom_call.1} parent=31 // pred_region
          %198 = dma.done [#allocation6], 512
        $region44: #{tpu_custom_call.1} parent=31 // pred_fallthru
          _
        %p199 = pneg %p37
        %p200 = pneg %p34
        %s201 = sand.u32 %s21, 1
        %s202 = scalar_lea.sflag [#allocation6], %s201
        %s203 = sand.u32 %s50, 1
        %s204 = smul.addr %s203, 16
        %s205 = scalar_lea.vmem [#allocation5], %s204
        %p206 = pneg %p63
        %p207 = pneg %p60
        %p208 = pneg %p84
        %p209 = pneg %p81
        %p210 = pneg %p110
        %p211 = pneg %p107
        %s212 = sand.u32 %s97, 1
        %s213 = scalar_lea.sflag [#allocation4], %s212
        %s214 = sand.u32 %s97, 1
        %s215 = smul.addr %s214, 32
        %s216 = scalar_lea.vmem [#allocation8], %s215
        %v217 = vld [vmem:[#allocation2] sm:$0xff]
        %v218 = vld [vmem:[#allocation2 + $0x8] sm:$0xff]
        %v219 = vld [vmem:[#allocation2 + $0x10] sm:$0xff]
        %v220 = vld [vmem:[#allocation2 + $0x18] sm:$0xff]
        %v221 = vld [vmem:[%s190] sm:$0xff]
        %v222 = vld [vmem:[%s190 + $0x8] sm:$0xff]
        %v223 = vld [vmem:[#allocation7] sm:$0xff]
        %v224 = vld [vmem:[#allocation7 + $0x8] sm:$0xff]
        %v225 = vld [vmem:[#allocation7 + $0x10] sm:$0xff]
        %v226 = vld [vmem:[#allocation7 + $0x18] sm:$0xff]
        %228 = vset.pattern.permute.xlu0 0
        %229 = vperm.xlu0 %228, %v223
        %v230 = vpop.permute.xlu0 %229
        %233 = vset.pattern.permute.xlu0 0
        %234 = vperm.xlu0 %233, %v224
        %v235 = vpop.permute.xlu0 %234
        %238 = vset.pattern.permute.xlu0 0
        %239 = vperm.xlu0 %238, %v225
        %v240 = vpop.permute.xlu0 %239
        %243 = vset.pattern.permute.xlu0 0
        %244 = vperm.xlu0 %243, %v226
        %v245 = vpop.permute.xlu0 %244
        %vm247 = vcmask 130048
        %v249 = vsel %vm247, %v217, 0
        %v252 = vsel %vm247, %v218, 0
        %v255 = vsel %vm247, %v219, 0
        %v258 = vsel %vm247, %v220, 0
        %260 = vmatprep.subr.mxu0 0.0
        %261 = vmatpush1.msra.mxu0 %v221
        %262 = vmatprep.subr.mxu0 0.0
        %263 = vmatpush1.msra.mxu0 %v222
        %264 = vmatprep.subr.mxu0 0.0
        %265 = vmatpush1.msra.mxu0 0.0
        %266 = vmatprep.subr.mxu0 0.0
        %267 = vmatpush1.msra.mxu0 0.0
        %268 = vmatprep.subr.mxu0 0.0
        %269 = vmatpush1.msra.mxu0 0.0
        %270 = vmatprep.subr.mxu0 0.0
        %271 = vmatpush1.msra.mxu0 0.0
        %272 = vmatprep.subr.mxu0 0.0
        %273 = vmatpush1.msra.mxu0 0.0
        %274 = vmatprep.subr.mxu0 0.0
        %275 = vmatpush1.msra.mxu0 0.0
        %276 = vmatprep.subr.mxu0 0.0
        %277 = vmatpush1.msra.mxu0 0.0
        %278 = vmatprep.subr.mxu0 0.0
        %279 = vmatpush1.msra.mxu0 0.0
        %280 = vmatprep.subr.mxu0 0.0
        %281 = vmatpush1.msra.mxu0 0.0
        %282 = vmatprep.subr.mxu0 0.0
        %283 = vmatpush1.msra.mxu0 0.0
        %284 = vmatprep.subr.mxu0 0.0
        %285 = vmatpush1.msra.mxu0 0.0
        %286 = vmatprep.subr.mxu0 0.0
        %287 = vmatpush1.msra.mxu0 0.0
        %288 = vmatprep.subr.mxu0 0.0
        %289 = vmatpush1.msra.mxu0 0.0
        %290 = vmatprep.subr.mxu0 0.0
        %291 = vmatpush1.msra.mxu0 0.0
        %292 = vmatprep.subr.mxu0 0.0
        %293 = vmatpush1.msra.mxu0 0.0
        %294 = vmatprep.subr.mxu0 0.0
        %295 = vmatpush1.msra.mxu0 0.0
        %296 = vmatprep.subr.mxu0 0.0
        %297 = vmatpush1.msra.mxu0 0.0
        %298 = vmatprep.subr.mxu0 0.0
        %299 = vmatpush1.msra.mxu0 0.0
        %300 = vmatprep.subr.mxu0 0.0
        %301 = vmatpush1.msra.mxu0 0.0
        %302 = vmatprep.subr.mxu0 0.0
        %303 = vmatpush1.msra.mxu0 0.0
        %304 = vmatprep.subr.mxu0 0.0
        %305 = vmatpush1.msra.mxu0 0.0
        %306 = vmatprep.subr.mxu0 0.0
        %307 = vmatpush1.msra.mxu0 0.0
        %308 = vmatprep.subr.mxu0 0.0
        %309 = vmatpush1.msra.mxu0 0.0
        %310 = vmatprep.subr.mxu0 0.0
        %311 = vmatpush1.msra.mxu0 0.0
        %312 = vmatprep.subr.mxu0 0.0
        %313 = vmatpush1.msra.mxu0 0.0
        %314 = vmatprep.subr.mxu0 0.0
        %315 = vmatpush1.msra.mxu0 0.0
        %316 = vmatprep.subr.mxu0 0.0
        %317 = vmatpush1.msra.mxu0 0.0
        %318 = vmatprep.subr.mxu0 0.0
        %319 = vmatpush1.msra.mxu0 0.0
        %320 = vmatprep.subr.mxu0 0.0
        %321 = vmatpush1.msra.mxu0 0.0
        %322 = vmatprep.subr.mxu0 0.0
        %323 = vmatpush1.msra.mxu0 0.0
        %324 = vmatprep.mubr.f32.mxu0 0.0
        %325 = vmatmul.mubr.f32.gmra.mrb[0].mxu0 %v249
        %v326 = vpop.f32.mrb[0].mxu0
        %v327 = vadd.f32 %v230, %v326
        %v328 = vpop.f32.mrb[0].mxu0
        %329 = vmatprep.mubr.f32.mxu0 0.0
        %330 = vmatmul.mubr.f32.gmra.mrb[0].mxu0 %v252
        %v331 = vpop.f32.mrb[0].mxu0
        %v332 = vadd.f32 %v235, %v331
        %v333 = vpop.f32.mrb[0].mxu0
        %334 = vmatprep.mubr.f32.mxu0 0.0
        %335 = vmatmul.mubr.f32.gmra.mrb[0].mxu0 %v255
        %v336 = vpop.f32.mrb[0].mxu0
        %v337 = vadd.f32 %v240, %v336
        %v338 = vpop.f32.mrb[0].mxu0
        %339 = vmatprep.mubr.f32.mxu0 0.0
        %340 = vmatmul.mubr.f32.gmra.mrb[0].mxu0 %v258
        %v341 = vpop.f32.mrb[0].mxu0
        %v342 = vadd.f32 %v245, %v341
        %v343 = vpop.f32.mrb[0].mxu0
        %344 = vdwg.mxu0
        %v345 = vmax.f32 %v327, 0.0
        %v346 = vmax.f32 %v332, 0.0
        %v347 = vmax.f32 %v337, 0.0
        %v348 = vmax.f32 %v342, 0.0
        %349 = vst [vmem:[%s216] sm:$0xff] %v345
        %350 = vst [vmem:[%s216 + $0x8] sm:$0xff] %v346
        %351 = vst [vmem:[%s216 + $0x10] sm:$0xff] %v347
        %352 = vst [vmem:[%s216 + $0x18] sm:$0xff] %v348
        %s353 = sand.u32 %s97, 1
        %s354 = scalar_lea.sflag [#allocation4], %s353
        %s355 = sand.u32 %s97, 1
        %s356 = smul.addr %s355, 32
        %s357 = scalar_lea.vmem [#allocation8], %s356
        // Predicated region
        $region45: #{tpu_custom_call.1} parent=31 // pred_check
          %p358 = pneg %p107
        $region46: #{tpu_custom_call.1} parent=31 // pred_check_branch
          %360 = sbr.rel (%p358) target = $region48
        $region47: #{tpu_custom_call.1} parent=31 // pred_region
          %s362 = ssub.s32 512, 512
          %363 = vsyncadd %s354, %s362
          %s364 = smul.addr %s21, 128
          %s365 = scalar_lea.hbm %s3, %s364
          %s366 = sshll.u32 %s357, 4
          %s367 = int_to_ptr.vmem [resolvable:$true] %s366
          %372 = dma.vmem_to_hbm [thread:$0]  %s367, 512, %s365, %s354, 128, 640, 8
        $region48: #{tpu_custom_call.1} parent=31 // pred_fallthru
          _
      $region32: #{tpu_custom_call.1} parent=5 // pred_fallthru
        _
      %p373 = scmp.le.s32.totalorder 2, %s16
      // Predicated region
      $region49: #{tpu_custom_call.1} parent=5 // pred_check
        %p374 = pneg %p373
      $region50: #{tpu_custom_call.1} parent=5 // pred_check_branch
        %376 = sbr.rel (%p374) target = $region52
      $region51: #{tpu_custom_call.1} parent=5 // pred_region
        %s377 = ssub.s32 %s16, 2
        // Predicated region
        $region53: #{tpu_custom_call.1} parent=51 // pred_check
          %p378 = pneg %p113
        $region54: #{tpu_custom_call.1} parent=51 // pred_check_branch
          %380 = sbr.rel (%p378) target = $region56
        $region55: #{tpu_custom_call.1} parent=51 // pred_region
          %s381 = sand.u32 %s98, 1
          %s382 = scalar_lea.sflag [#allocation4], %s381
          %s383 = sand.u32 %s98, 1
          %s384 = smul.addr %s383, 32
          %s385 = scalar_lea.vmem [#allocation8], %s384
          %386 = dma.done %s382, 512
        $region56: #{tpu_custom_call.1} parent=51 // pred_fallthru
          _
      $region52: #{tpu_custom_call.1} parent=5 // pred_fallthru
        _
    $region6: #{tpu_custom_call.1} parent=1 // loop_footer
      %s20 = sadd.s32 1, %s16
    $region7: #{tpu_custom_call.1} parent=1 // loop_footer_branch
      %15 = sbr.rel target = $region3
    $region8: #{tpu_custom_call.1} parent=1 // loop_exit
      _
    %387 = vsyncpa [#allocation3], 1
    %s388 = scalar_lea.sflag [#allocation3], 1
    %389 = vsyncpa %s388, 1
    %390 = vsyncpa [#allocation6], 1
    %s391 = scalar_lea.sflag [#allocation6], 1
    %392 = vsyncpa %s391, 1
    %393 = vsyncpa [#allocation4], 1
    %s394 = scalar_lea.sflag [#allocation4], 1
    %395 = vsyncpa %s394, 1

</llo_original>
